<compile_context>
chip_gen: v7x
topology: tpu7x:2x2x1
jax: 0.10.0
libtpu: 0.0.40
codegen_flags: <defaults>
</compile_context>

<pallas_src>
import jax
import jax.numpy as jnp
from jax import lax
from jax.experimental import pallas as pl
from jax.experimental.pallas import tpu as pltpu

LANE = 128
TARGET_BLOCK_BYTES = 4 * 1024 * 1024   # ~4 MiB per input block (x2 double-buffered)
MAX_VIEW_WIDTH = 8192                  # cap on the 2-D view's minor dim
MIN_LANE_EFFICIENCY = 0.25             # below this, use the rare pad fallback
VMEM_LIMIT_BYTES = 48 * 1024 * 1024    # generous headroom, under every chip's VMEM


def _cdiv(a, b):
    return -(-a // b)


def _num_splits_for_chip():
    """2-way 'parallel' split only where one chip has 2 TensorCores (v7x)."""
    # TODO(synk): on v7x, confirm in a profile that the leading "parallel" axis
    # really shards across both TensorCores; otherwise switch to
    # pltpu.CORE_PARALLEL / pl.core_map over a tensorcore mesh.
    try:
        kind = (jax.devices()[0].device_kind or "").lower()
        if "v7" in kind:
            return 2
    except Exception:
        pass
    return 1


def _plan_width(shape, n):
    """Pick a free-reshape 2-D view (rows, width) of the flattened input.

    Returns (width, needs_pad).  needs_pad=True only when no contiguous suffix
    product of the shape gives decent lane utilisation; the caller then pads
    the flat array up to a multiple of 128 (one extra HBM copy, rare path).
    """
    if n % LANE == 0:
        return LANE, False                      # perfect lane-dense view
    best_w, best_eff = None, -1.0
    prod = 1
    for d in reversed(shape):
        prod *= int(d)
        if prod > MAX_VIEW_WIDTH:
            break
        eff = prod / float(_cdiv(prod, LANE) * LANE)
        if eff > best_eff:
            best_w, best_eff = prod, eff
    if best_w is not None and best_eff >= MIN_LANE_EFFICIENCY:
        return best_w, False
    if best_w is None:
        # Last dim alone exceeds the cap; large widths are always lane-dense.
        return int(shape[-1]), False
    return LANE, True                           # pathological shape: pad fallback


def _make_gan_loss_kernel(is_disc, target_is_real, tile_m, width, rows,
                          tail_lanes, steps_per_split, total_steps):
    """Per grid step: reduce f(x) over the block's valid elements into the
    (1, 1, width) resident output accumulator."""
    # Blocks ending at or before `full_limit` rows need no masking at all.
    full_limit = rows if tail_lanes == width else rows - 1

    def kernel(x_ref, o_ref):
        c = pl.program_id(0)                    # split axis ("parallel")
        k = pl.program_id(1)                    # reduction axis ("arbitrary")

        @pl.when(k == 0)
        def _init():
            o_ref[...] = jnp.zeros_like(o_ref)

        # In-kernel cast: input streams from HBM in its native dtype.
        x = x_ref[...].astype(jnp.float32)
        if is_disc:
            xv = -x if target_is_real else x
            v = jnp.maximum(1.0 + xv, 0.0)      # nn.ReLU()(1 + input)
        else:
            v = -x                              # generator: -input (mean later)

        step = c * steps_per_split + k          # pre-clamp step index
        row0 = jnp.minimum(step, total_steps - 1) * tile_m   # loaded row offset
        is_full = jnp.logical_and(step < total_steps, row0 + tile_m <= full_limit)

        @pl.when(is_full)
        def _fast():                            # hot path: no mask work at all
            o_ref[...] += jnp.sum(v, axis=0, keepdims=True)[None]

        @pl.when(jnp.logical_not(is_full))
        def _masked():                          # tail block / redundant clamped step
            r = lax.broadcasted_iota(jnp.int32, (tile_m, 1), 0) + row0
            valid = r < rows                    # (tile_m, 1) row mask
            if tail_lanes != width:             # pad fallback: partial last row
                l = lax.broadcasted_iota(jnp.int32, (1, width), 1)
                valid = jnp.logical_and(
                    valid, jnp.logical_or(r < rows - 1, l < tail_lanes))
            valid = jnp.logical_and(valid, step < total_steps)
            # jnp.where (not multiply) so OOB garbage / pad values never leak.
            vv = jnp.where(valid, v, 0.0)
            o_ref[...] += jnp.sum(vv, axis=0, keepdims=True)[None]

    return kernel


def gan_loss(x, target_is_real, is_disc=False, *, gan_type='hinge',
             real_label_val=1.0, fake_label_val=0.0, loss_weight=1.0,
             block_bytes=TARGET_BLOCK_BYTES, _force_splits=None):
    """JAX/Pallas equivalent of GANLoss.forward for gan_type='hinge'."""
    if gan_type != 'hinge':
        raise NotImplementedError(f'GAN type {gan_type} is not implemented.')
    # real_label_val / fake_label_val are unused by the hinge forward branch.

    if x.ndim == 0:
        x = x.reshape(1, 1)
    n = int(x.size)
    itemsize = jnp.dtype(x.dtype).itemsize

    width, needs_pad = _plan_width(x.shape, n)
    if needs_pad:
        # Rare path: no decent free 2-D view exists -> one extra HBM copy.
        rows = _cdiv(n, LANE)
        flat = jnp.pad(x.reshape(-1), (0, rows * LANE - n))
        view = flat.reshape(rows, LANE)
        tail_lanes = n - (rows - 1) * LANE      # valid lanes in the last row
    else:
        view = x.reshape(-1, width)             # free reshape (contiguous suffix)
        rows = view.shape[0]
        tail_lanes = width                      # every view element is valid

    # Block size: ~block_bytes of (lane-padded) input per grid step, sublane
    # count a multiple of 32 (legal for f32/bf16/i8) or the full extent.
    row_bytes = _cdiv(width, LANE) * LANE * itemsize
    target_rows = max(32, block_bytes // row_bytes)
    tile_m = rows if rows <= target_rows else (target_rows // 32) * 32

    total_steps = _cdiv(rows, tile_m)
    num_splits = _force_splits if _force_splits is not None else _num_splits_for_chip()
    if total_steps < 2:
        num_splits = 1
    steps_per_split = _cdiv(total_steps, num_splits)

    kernel = _make_gan_loss_kernel(bool(is_disc), bool(target_is_real), tile_m,
                                   width, rows, tail_lanes, steps_per_split,
                                   total_steps)

    def x_map(c, k):
        # Clamp so every DMA stays in-bounds; the redundant clamped trailing
        # step (only with an uneven 2-way split) is fully masked in-kernel.
        return (jnp.minimum(c * steps_per_split + k, total_steps - 1), 0)

    partials = pl.pallas_call(
        kernel,
        out_shape=jax.ShapeDtypeStruct((num_splits, 1, width), jnp.float32),
        grid=(num_splits, steps_per_split),
        in_specs=[pl.BlockSpec((tile_m, width), x_map)],
        out_specs=pl.BlockSpec((1, 1, width), lambda c, k: (c, 0, 0)),
        compiler_params=pltpu.CompilerParams(
            dimension_semantics=("parallel", "arbitrary"),
            vmem_limit_bytes=VMEM_LIMIT_BYTES),
        cost_estimate=pl.CostEstimate(
            flops=4 * n, transcendentals=0,
            bytes_accessed=n * itemsize + num_splits * width * 4),
    )(view)

    scale = 1.0 if is_disc else float(loss_weight)
    # Tiny final reduction over the per-split lane-wise partial sums.
    return jnp.sum(partials) * jnp.float32(scale / n)


def _reference_gan_loss(x, target_is_real, is_disc, loss_weight=1.0):
    x = x.astype(jnp.float32)
    if is_disc:
        xi = -x if target_is_real else x
        return jnp.mean(jnp.maximum(1.0 + xi, 0.0))
    return -jnp.mean(x) * loss_weight


if __name__ == "__main__":
    key = jax.random.PRNGKey(0)
    ks = jax.random.split(key, 4)

    # Small NCHW prediction map, like the PyTorch discriminator usage.
    x_small = jax.random.normal(ks[0], (2, 4, 16, 16), dtype=jnp.float32)
    # Ragged map (n % 128 != 0): exercises the free (2000, 125) suffix view.
    x_med = jax.random.normal(ks[1], (2, 8, 125, 125), dtype=jnp.float32)
    # bf16 input: exercises the in-kernel cast.
    x_bf16 = jax.random.normal(ks[2], (2, 4, 16, 16)).astype(jnp.bfloat16)
    # Pathological thin shape: pad fallback + partial-lane tail mask.
    x_thin = jax.random.normal(ks[3], (3000, 3), dtype=jnp.float32)

    loss_weight = 0.5
    cases = [
        # (x, target_is_real, is_disc, extra kwargs)
        (x_small, True,  True,  {}),
        (x_small, False, True,  {}),
        (x_small, True,  False, {}),
        (x_med,   True,  True,  {}),
        (x_med,   False, False, {}),
        # multi-block grid + partial last block + even 2-way split
        (x_med,   True,  True,  dict(block_bytes=256 * 1024, _force_splits=2)),
        (x_med,   True,  False, dict(block_bytes=256 * 1024, _force_splits=2)),
        # odd step count + 2-way split -> redundant clamped step masking
        (x_med,   False, True,  dict(block_bytes=704 * 512, _force_splits=2)),
        # bf16 input
        (x_bf16,  True,  True,  {}),
        # pad-fallback path (partial last lane row)
        (x_thin,  False, True,  {}),
        (x_thin,  True,  False, {}),
    ]
    for xx, tir, disc, kw in cases:
        got = jax.block_until_ready(
            gan_loss(xx, tir, disc, loss_weight=loss_weight, **kw))
        want = _reference_gan_loss(xx, tir, disc, loss_weight)
        assert jnp.allclose(got, want, rtol=1e-4, atol=1e-5), (
            xx.shape, tir, disc, kw, got, want)

    print("KERNEL_OK")
</pallas_src>

<mosaic_0001>
module attributes {stable_mosaic.version = 11 : i64} {
  func.func @kernel(%arg0: i32, %arg1: i32, %arg2: memref<16x128xf32, #tpu.memory_space<vmem>>, %arg3: memref<1x1x128xf32, #tpu.memory_space<vmem>>) attributes {dimension_semantics = [#tpu.dimension_semantics<parallel>, #tpu.dimension_semantics<arbitrary>], iteration_bounds = array<i64: 1, 1>, scalar_prefetch = 0 : i64, scratch_operands = 0 : i64, tpu.core_type = #tpu.core_type<tc>, window_params = [{transform_indices = @transform_0, window_bounds = array<i64: 16, 128>}, {transform_indices = @transform_1, window_bounds = array<i64: 1, 1, 128>}]} {
    %c0_i32 = arith.constant 0 : i32
    %0 = arith.cmpi eq, %arg1, %c0_i32 : i32
    %1 = arith.extui %0 : i1 to i32
    %c0_i32_0 = arith.constant 0 : i32
    %2 = arith.cmpi ne, %1, %c0_i32_0 : i32
    scf.if %2 {
      %cst_10 = arith.constant 0.000000e+00 : f32
      %23 = vector.broadcast %cst_10 : f32 to vector<1x1x128xf32>
      %c0_11 = arith.constant 0 : index
      %c0_12 = arith.constant 0 : index
      %c0_13 = arith.constant 0 : index
      %24 = vector.load %arg3[%c0_11, %c0_12, %c0_13] : memref<1x1x128xf32, #tpu.memory_space<vmem>>, vector<1x1x128xf32>
      tpu.vector_store %arg3[%c0_11, %c0_12, %c0_13], %23 {strides = array<i32>} : memref<1x1x128xf32, #tpu.memory_space<vmem>>, vector<1x1x128xf32>,
    } else {
    }
    %c0 = arith.constant 0 : index
    %c0_1 = arith.constant 0 : index
    %3 = vector.load %arg2[%c0, %c0_1] : memref<16x128xf32, #tpu.memory_space<vmem>>, vector<16x128xf32>
    %cst = arith.constant 0.000000e+00 : f32
    %4 = vector.broadcast %cst : f32 to vector<16x128xf32>
    %5 = arith.subf %4, %3 : vector<16x128xf32>
    %cst_2 = arith.constant 1.000000e+00 : f32
    %6 = vector.broadcast %cst_2 : f32 to vector<16x128xf32>
    %7 = arith.addf %6, %5 : vector<16x128xf32>
    %cst_3 = arith.constant 0.000000e+00 : f32
    %8 = vector.broadcast %cst_3 : f32 to vector<16x128xf32>
    %9 = arith.maximumf %7, %8 : vector<16x128xf32>
    %c1_i32 = arith.constant 1 : i32
    %10 = arith.muli %arg0, %c1_i32 : i32
    %11 = arith.addi %10, %arg1 : i32
    %c0_i32_4 = arith.constant 0 : i32
    %12 = arith.minsi %11, %c0_i32_4 : i32
    %c16_i32 = arith.constant 16 : i32
    %13 = arith.muli %12, %c16_i32 : i32
    %c1_i32_5 = arith.constant 1 : i32
    %14 = arith.cmpi slt, %11, %c1_i32_5 : i32
    %c16_i32_6 = arith.constant 16 : i32
    %15 = arith.addi %13, %c16_i32_6 : i32
    %c16_i32_7 = arith.constant 16 : i32
    %16 = arith.cmpi sle, %15, %c16_i32_7 : i32
    %17 = arith.andi %14, %16 : i1
    %18 = arith.extui %17 : i1 to i32
    %c0_i32_8 = arith.constant 0 : i32
    %19 = arith.cmpi ne, %18, %c0_i32_8 : i32
    scf.if %19 {
      %c0_10 = arith.constant 0 : index
      %c0_11 = arith.constant 0 : index
      %c0_12 = arith.constant 0 : index
      %23 = vector.load %arg3[%c0_10, %c0_11, %c0_12] : memref<1x1x128xf32, #tpu.memory_space<vmem>>, vector<1x1x128xf32>
      %cst_13 = arith.constant dense<0.000000e+00> : vector<128xf32>
      %24 = vector.multi_reduction <add>, %9, %cst_13 [0] : vector<16x128xf32> to vector<128xf32>
      %25 = vector.shape_cast %24 : vector<128xf32> to vector<1x128xf32>
      %26 = vector.shape_cast %25 : vector<1x128xf32> to vector<1x1x128xf32>
      %27 = arith.addf %23, %26 : vector<1x1x128xf32>
      %c0_14 = arith.constant 0 : index
      %c0_15 = arith.constant 0 : index
      %c0_16 = arith.constant 0 : index
      %28 = vector.load %arg3[%c0_14, %c0_15, %c0_16] : memref<1x1x128xf32, #tpu.memory_space<vmem>>, vector<1x1x128xf32>
      tpu.vector_store %arg3[%c0_14, %c0_15, %c0_16], %27 {strides = array<i32>} : memref<1x1x128xf32, #tpu.memory_space<vmem>>, vector<1x1x128xf32>,
    } else {
    }
    %true = arith.constant true
    %20 = arith.xori %17, %true : i1
    %21 = arith.extui %20 : i1 to i32
    %c0_i32_9 = arith.constant 0 : i32
    %22 = arith.cmpi ne, %21, %c0_i32_9 : i32
    scf.if %22 {
      %23 = tpu.iota {dimensions = array<i32: 0>} : vector<16x1xi32>
      %24 = vector.broadcast %13 : i32 to vector<16x1xi32>
      %25 = arith.addi %23, %24 : vector<16x1xi32>
      %c16_i32_10 = arith.constant 16 : i32
      %26 = vector.broadcast %c16_i32_10 : i32 to vector<16x1xi32>
      %27 = arith.cmpi slt, %25, %26 : vector<16x1xi32>
      %c1_i32_11 = arith.constant 1 : i32
      %28 = arith.cmpi slt, %11, %c1_i32_11 : i32
      %29 = vector.broadcast %28 : i1 to vector<16x1xi1>
      %30 = arith.andi %27, %29 : vector<16x1xi1>
      %cst_12 = arith.constant 0.000000e+00 : f32
      %31 = vector.shape_cast %30 : vector<16x1xi1> to vector<16x1xi1>
      %32 = vector.broadcast %31 : vector<16x1xi1> to vector<16x128xi1>
      %33 = vector.broadcast %cst_12 : f32 to vector<16x128xf32>
      %34 = arith.select %32, %9, %33 : vector<16x128xi1>, vector<16x128xf32>
      %c0_13 = arith.constant 0 : index
      %c0_14 = arith.constant 0 : index
      %c0_15 = arith.constant 0 : index
      %35 = vector.load %arg3[%c0_13, %c0_14, %c0_15] : memref<1x1x128xf32, #tpu.memory_space<vmem>>, vector<1x1x128xf32>
      %cst_16 = arith.constant dense<0.000000e+00> : vector<128xf32>
      %36 = vector.multi_reduction <add>, %34, %cst_16 [0] : vector<16x128xf32> to vector<128xf32>
      %37 = vector.shape_cast %36 : vector<128xf32> to vector<1x128xf32>
      %38 = vector.shape_cast %37 : vector<1x128xf32> to vector<1x1x128xf32>
      %39 = arith.addf %35, %38 : vector<1x1x128xf32>
      %c0_17 = arith.constant 0 : index
      %c0_18 = arith.constant 0 : index
      %c0_19 = arith.constant 0 : index
      %40 = vector.load %arg3[%c0_17, %c0_18, %c0_19] : memref<1x1x128xf32, #tpu.memory_space<vmem>>, vector<1x1x128xf32>
      tpu.vector_store %arg3[%c0_17, %c0_18, %c0_19], %39 {strides = array<i32>} : memref<1x1x128xf32, #tpu.memory_space<vmem>>, vector<1x1x128xf32>,
    } else {
    }
    return
  }
  func.func @transform_0(%arg0: i32, %arg1: i32) -> (i32, i32) {
    %c1_i32 = arith.constant 1 : i32
    %0 = arith.muli %arg0, %c1_i32 : i32
    %1 = arith.addi %0, %arg1 : i32
    %c0_i32 = arith.constant 0 : i32
    %2 = arith.minsi %1, %c0_i32 : i32
    %c0_i32_0 = arith.constant 0 : i32
    %c0_i32_1 = arith.constant 0 : i32
    return %2, %c0_i32_0 : i32, i32
  }
  func.func @transform_1(%arg0: i32, %arg1: i32) -> (i32, i32, i32) {
    %c0_i32 = arith.constant 0 : i32
    %c0_i32_0 = arith.constant 0 : i32
    %c0_i32_1 = arith.constant 0 : i32
    return %arg0, %c0_i32, %c0_i32_0 : i32, i32, i32
  }
}

</mosaic_0001>

<llo_original>
// kernel: tpu_custom_call.1
$region0: #{tpu_custom_call.1}
  #allocation0 [shape = 'u32[]', space=smem, size = 0x4, offset = 0x4, fixed_abs, tag = 'smem constant byte address 0x4 - core index']
  #allocation1 [shape = 'u32[144,128]{1,0:T(1,128)}', space=vmem, size = 0x12000, scoped, tag = 'internal scratch']
  %s0 = inlined_call_operand.hbm [shape: f32[16,128], index: 0, kind: input, shape index: {}]
  %s1 = inlined_call_operand.hbm [shape: f32[1,1,128], index: 1, kind: output, shape index: {}]
  %s2 = sld [smem:[#allocation0]]
  $region30: #{tpu_custom_call.1} parent=0
    _
  %s4 = ssub.s32 1, %s2
  %s5 = scalar_select 0, %s4, %s2
  $region1: #{tpu_custom_call.1} parent=0
    #allocation2 [shape = 'u8[8192]{0}', space=vmem, size = 0x2000, scoped, tag = 'input window, operand 0, single buffered']
    #allocation3 [shape = 's32[1]{0}', space=sflag, size = 0x4, scoped, tag = 'scoped memory for tpu_custom_call.1']
    #allocation4 [shape = 's32[1]{0}', space=sflag, size = 0x4, scoped, tag = 'scoped memory for tpu_custom_call.1']
    #allocation5 [shape = 'u8[512]{0}', space=vmem, size = 0x400, scoped, tag = 'output window, operand 0, single buffered']
    %6 = vsyncpa [#allocation3], 0
    %7 = vsyncpa [#allocation4], 0
    // Predicated region
    $region2: #{tpu_custom_call.1} parent=1 // pred_check
      _
    $region3: #{tpu_custom_call.1} parent=1 // pred_check_branch
      %9 = sbr.rel (0) target = $region5
    $region4: #{tpu_custom_call.1} parent=1 // pred_region
      %s10 = sadd.s32 0, 0
      %p11 = scmp.lt.s32.totalorder %s10, 0
      %s12 = scalar_select %p11, %s10, 0
      %s13 = smul.u32 2, %s12
      %s15 = ssub.s32 256, 256
      %16 = vsyncadd [#allocation3], %s15
      %s17 = smul.addr %s13, 128
      %s18 = scalar_lea.hbm %s0, %s17
      %s19 = sshll.u32 [#allocation2], 4
      %s20 = int_to_ptr.vmem [resolvable:$true] %s19
      %25 = dma.hbm_to_vmem [thread:$0]  %s18, 256, %s20, [#allocation3], 128, 128, 8
    $region5: #{tpu_custom_call.1} parent=1 // pred_fallthru
      _
    // Predicated region
    $region6: #{tpu_custom_call.1} parent=1 // pred_check
      _
    $region7: #{tpu_custom_call.1} parent=1 // pred_check_branch
      %27 = sbr.rel (0) target = $region9
    $region8: #{tpu_custom_call.1} parent=1 // pred_region
      %28 = dma.done [#allocation3], 256
    $region9: #{tpu_custom_call.1} parent=1 // pred_fallthru
      _
    %s29 = sadd.s32 0, 0
    %p30 = scmp.lt.s32.totalorder %s29, 0
    %s31 = scalar_select %p30, %s29, 0
    %s32 = smul.u32 2, %s31
    %p33 = scmp.eq.s32.totalorder 0, 0
    // Predicated region
    $region10: #{tpu_custom_call.1} parent=1 // pred_check
      %p34 = pneg %p33
    $region11: #{tpu_custom_call.1} parent=1 // pred_check_branch
      %36 = sbr.rel (%p34) target = $region13
    $region12: #{tpu_custom_call.1} parent=1 // pred_region
      %37 = vst [vmem:[#allocation5] sm:$0x1] 0.0
    $region13: #{tpu_custom_call.1} parent=1 // pred_fallthru
      _
    %v38 = vld [vmem:[#allocation2] sm:$0xff]
    %v39 = vld [vmem:[#allocation2 + $0x8] sm:$0xff]
    %v40 = vsub.f32 0.0, %v38
    %v41 = vsub.f32 0.0, %v39
    %v42 = vadd.f32 %v40, 1.0
    %v43 = vadd.f32 %v41, 1.0
    %v44 = vmax.f32 %v42, 0.0
    %v45 = vmax.f32 %v43, 0.0
    %s46 = sadd.s32 0, 0
    %p47 = scmp.lt.s32.totalorder %s46, 0
    %s48 = scalar_select %p47, %s46, 0
    %s49 = smul.u32 %s48, 16
    %p50 = scmp.lt.s32.totalorder %s46, 1
    %s51 = sadd.s32 %s49, 16
    %p52 = scmp.le.s32.totalorder %s51, 16
    %p53 = pnand %p50, %p52
    %p54 = pneg %p53
    // Predicated region
    $region14: #{tpu_custom_call.1} parent=1 // pred_check
      _
    $region15: #{tpu_custom_call.1} parent=1 // pred_check_branch
      %56 = sbr.rel (%p53) target = $region17
    $region16: #{tpu_custom_call.1} parent=1 // pred_region
      %v57 = vld [vmem:[#allocation5] sm:$0x1]
      %v58 = vadd.f32 %v44, %v45
      %v59 = vrot.slane %v58, 4
      %v60 = vadd.f32 %v58, %v59
      %v61 = vrot.slane %v60, 2
      %v62 = vadd.f32 %v60, %v61
      %v63 = vrot.slane %v62, 1
      %v64 = vadd.f32 %v62, %v63
      %v65 = vadd.f32 %v57, %v64
      %66 = vst [vmem:[#allocation5] sm:$0x1] %v65
    $region17: #{tpu_custom_call.1} parent=1 // pred_fallthru
      _
    %p67 = pneg %p54
    // Predicated region
    $region18: #{tpu_custom_call.1} parent=1 // pred_check
      _
    $region19: #{tpu_custom_call.1} parent=1 // pred_check_branch
      %69 = sbr.rel (%p54) target = $region21
    $region20: #{tpu_custom_call.1} parent=1 // pred_region
      %v70 = vlaneseq
      %v71 = vshrl.u32 %v70, 7
      %v72 = vadd.s32 %v71, 8
      %v73 = vstv %s49
      %v74 = vadd.s32 %v71, %v73
      %v75 = vadd.s32 %v72, %v73
      %vm76 = vcmp.lt.s32.totalorder %v74, 16
      %vm77 = vcmp.lt.s32.totalorder %v75, 16
      %s78 = scalar_select %p50, 1, 0
      %v79 = vstv %s78
      %vm80 = vcmp.eq.s32.totalorder %v79, 1
      %vm81 = vmand %vm76, %vm80
      %vm82 = vmand %vm77, %vm80
      %v83 = vsel %vm81, 1, 0
      %v84 = vsel %vm82, 1, 0
      %vm85 = vcmp.eq.s32.totalorder %v83, 1
      %vm86 = vcmp.eq.s32.totalorder %v84, 1
      %v87 = vsel %vm85, %v44, 0.0
      %v88 = vsel %vm86, %v45, 0.0
      %v89 = vld [vmem:[#allocation5] sm:$0x1]
      %v90 = vadd.f32 %v87, %v88
      %v91 = vrot.slane %v90, 4
      %v92 = vadd.f32 %v90, %v91
      %v93 = vrot.slane %v92, 2
      %v94 = vadd.f32 %v92, %v93
      %v95 = vrot.slane %v94, 1
      %v96 = vadd.f32 %v94, %v95
      %v97 = vadd.f32 %v89, %v96
      %98 = vst [vmem:[#allocation5] sm:$0x1] %v97
    $region21: #{tpu_custom_call.1} parent=1 // pred_fallthru
      _
    // Predicated region
    $region22: #{tpu_custom_call.1} parent=1 // pred_check
      _
    $region23: #{tpu_custom_call.1} parent=1 // pred_check_branch
      %100 = sbr.rel (0) target = $region25
    $region24: #{tpu_custom_call.1} parent=1 // pred_region
      %s102 = ssub.s32 16, 16
      %103 = vsyncadd [#allocation4], %s102
      %s105 = sshll.u32 [#allocation5], 4
      %s106 = int_to_ptr.vmem [resolvable:$true] %s105
      %108 = dma.vmem_to_hbm [thread:$0]  %s106, 16, %s1, [#allocation4]
    $region25: #{tpu_custom_call.1} parent=1 // pred_fallthru
      _
    // Predicated region
    $region26: #{tpu_custom_call.1} parent=1 // pred_check
      _
    $region27: #{tpu_custom_call.1} parent=1 // pred_check_branch
      %110 = sbr.rel (0) target = $region29
    $region28: #{tpu_custom_call.1} parent=1 // pred_region
      %111 = dma.done [#allocation4], 16
    $region29: #{tpu_custom_call.1} parent=1 // pred_fallthru
      _
    %112 = vsyncpa [#allocation3], 1
    %113 = vsyncpa [#allocation4], 1

</llo_original>
